<compile_context>
chip_gen: v5e
topology: v5e:2x2
jax: 0.10.0
libtpu: 0.0.40
codegen_flags: <defaults>
</compile_context>

<pallas_src>
import math
import functools

import jax
import jax.numpy as jnp
from jax import lax
from jax.experimental import pallas as pl
from jax.experimental.pallas import tpu as pltpu


# ---------------------------------------------------------------------------
# Fused Pallas kernel: edge affinity (X^T W Y) + point affinity (Ux^T Uy)
# ---------------------------------------------------------------------------
def _affinity_kernel(x_ref, w_ref, y_ref, ux_ref, uy_ref, me_ref, mp_ref):
    # x_ref : (Bt, C, Nx)   w_ref : (C, C)    y_ref : (Bt, C, Ny)
    # ux_ref: (Bt, Du, Px)  uy_ref: (Bt, Du, Py)
    # me_ref: (Bt, Nx, Ny)  mp_ref: (Bt, Px, Py)
    x = x_ref[...]
    w = w_ref[...]
    y = y_ref[...]
    ux = ux_ref[...]
    uy = uy_ref[...]

    # X^T @ W without an explicit transpose: contract X's channel axis (1)
    # against W's rows (0).  Result: (Bt, Nx, C).
    xtw = lax.dot_general(
        x, w,
        dimension_numbers=(((1,), (0,)), ((), ())),
        preferred_element_type=jnp.float32)

    # (X^T W) @ Y, batched over Bt, contracting the channel axis.
    # Result: (Bt, Nx, Ny).
    me = lax.dot_general(
        xtw, y,
        dimension_numbers=(((2,), (1,)), ((0,), (0,))),
        preferred_element_type=jnp.float32)
    me_ref[...] = me.astype(me_ref.dtype)

    # Ux^T @ Uy without an explicit transpose: batched over Bt, contracting
    # the feature axis (1) of both operands.  Result: (Bt, Px, Py).
    mp = lax.dot_general(
        ux, uy,
        dimension_numbers=(((1,), (1,)), ((0,), (0,))),
        preferred_element_type=jnp.float32)
    mp_ref[...] = mp.astype(mp_ref.dtype)


# ---------------------------------------------------------------------------
# Wrapper
# ---------------------------------------------------------------------------
def affinity_pallas(X, weight, Y, Ux, Uy, *, batch_block=None):
    """Fused Me = X^T W Y  and  Mp = Ux^T Uy.

    X, Y:  (B, C, Nx), (B, C, Ny)   with C = 2*d
    Ux,Uy: (B, Du, Px), (B, Du, Py)
    weight: (C, C)
    Returns (Me: (B, Nx, Ny) f32, Mp: (B, Px, Py) f32).
    """
    B, C, Nx = X.shape
    _, _, Ny = Y.shape
    _, Du, Px = Ux.shape
    _, _, Py = Uy.shape

    # Batch elements per grid step — amortizes the ~0.35us per-step overhead.
    if batch_block is None:
        batch_block = B if B <= 16 else 8
    Bt = int(batch_block)

    # Pad batch so the grid is exact (padded rows are sliced off afterwards).
    Bp = ((B + Bt - 1) // Bt) * Bt
    if Bp != B:
        pad = ((0, Bp - B), (0, 0), (0, 0))
        X = jnp.pad(X, pad)
        Y = jnp.pad(Y, pad)
        Ux = jnp.pad(Ux, pad)
        Uy = jnp.pad(Uy, pad)

    grid = (Bp // Bt,)

    in_bytes = (X.size * X.dtype.itemsize + Y.size * Y.dtype.itemsize +
                Ux.size * Ux.dtype.itemsize + Uy.size * Uy.dtype.itemsize +
                weight.size * weight.dtype.itemsize)
    out_bytes = 4 * (Bp * Nx * Ny + Bp * Px * Py)
    cost = pl.CostEstimate(
        flops=2 * Bp * (Nx * C * C + Nx * C * Ny + Du * Px * Py),
        transcendentals=0,
        bytes_accessed=in_bytes + out_bytes,
    )

    me, mp = pl.pallas_call(
        _affinity_kernel,
        out_shape=(
            jax.ShapeDtypeStruct((Bp, Nx, Ny), jnp.float32),
            jax.ShapeDtypeStruct((Bp, Px, Py), jnp.float32),
        ),
        grid=grid,
        in_specs=[
            pl.BlockSpec((Bt, C, Nx), lambda b: (b, 0, 0)),
            pl.BlockSpec((C, C), lambda b: (0, 0)),
            pl.BlockSpec((Bt, C, Ny), lambda b: (b, 0, 0)),
            pl.BlockSpec((Bt, Du, Px), lambda b: (b, 0, 0)),
            pl.BlockSpec((Bt, Du, Py), lambda b: (b, 0, 0)),
        ],
        out_specs=(
            pl.BlockSpec((Bt, Nx, Ny), lambda b: (b, 0, 0)),
            pl.BlockSpec((Bt, Px, Py), lambda b: (b, 0, 0)),
        ),
        compiler_params=pltpu.CompilerParams(
            dimension_semantics=("parallel",)),
        cost_estimate=cost,
    )(X, weight, Y, Ux, Uy)

    if Bp != B:
        me = me[:B]
        mp = mp[:B]
    return me, mp


@functools.partial(jax.jit, static_argnames=("compute_dtype",))
def affinity_forward(X, Y, Ux, Uy, lambda1, lambda2, w1=1.0, w2=1.0,
                     compute_dtype=jnp.float32):
    d = lambda1.shape[0]
    assert X.shape[1] == Y.shape[1] == 2 * d

    # Parameter glue (tiny (d,d) elementwise + concat) in plain JAX.
    # w1/w2 are traced scalars -> no recompiles for different weights.
    l1 = jnp.maximum(lambda1 + lambda1.T, 0.0) * w1
    l2 = jnp.maximum(lambda2 + lambda2.T, 0.0) * w2
    weight = jnp.concatenate(
        [jnp.concatenate([l1, l2], axis=0),
         jnp.concatenate([l2, l1], axis=0)], axis=1)          # (2d, 2d)

    # Optional reduced-precision MXU inputs (accumulation stays f32 inside
    # the kernel via preferred_element_type).
    Xc = X.astype(compute_dtype)
    Yc = Y.astype(compute_dtype)
    Uxc = Ux.astype(compute_dtype)
    Uyc = Uy.astype(compute_dtype)
    Wc = weight.astype(compute_dtype)

    return affinity_pallas(Xc, Wc, Yc, Uxc, Uyc)


def init_affinity_params(key, d):
    # Matches Affinity.reset_parameters(): U(-stdv, stdv) + eye(d)/2,
    # with stdv = 1/sqrt(d*2).
    stdv = 1.0 / math.sqrt(d * 2)
    k1, k2 = jax.random.split(key)
    lambda1 = jax.random.uniform(k1, (d, d), jnp.float32, -stdv, stdv) \
        + jnp.eye(d, dtype=jnp.float32) / 2.0
    lambda2 = jax.random.uniform(k2, (d, d), jnp.float32, -stdv, stdv) \
        + jnp.eye(d, dtype=jnp.float32) / 2.0
    return lambda1, lambda2


# ---------------------------------------------------------------------------
# Demo / correctness check
# ---------------------------------------------------------------------------
if __name__ == "__main__":
    key = jax.random.PRNGKey(0)
    d = 4            # edge feature half-dim -> channels = 2*d = 8
    B = 2            # batch
    Nx, Ny = 8, 8    # number of edges per graph
    Du = 32          # unary (pointwise) feature dim
    Px, Py = 8, 8    # number of points per graph

    kp, kx, ky, kux, kuy = jax.random.split(key, 5)
    lambda1, lambda2 = init_affinity_params(kp, d)

    X = jax.random.normal(kx, (B, 2 * d, Nx), jnp.float32)
    Y = jax.random.normal(ky, (B, 2 * d, Ny), jnp.float32)
    Ux = jax.random.normal(kux, (B, Du, Px), jnp.float32)
    Uy = jax.random.normal(kuy, (B, Du, Py), jnp.float32)

    Me, Mp = affinity_forward(X, Y, Ux, Uy, lambda1, lambda2,
                              w1=1.0, w2=1.0)
    Me, Mp = jax.block_until_ready((Me, Mp))

    # Pure-JAX reference for sanity.
    l1 = jnp.maximum(lambda1 + lambda1.T, 0.0)
    l2 = jnp.maximum(lambda2 + lambda2.T, 0.0)
    W = jnp.concatenate(
        [jnp.concatenate([l1, l2], axis=0),
         jnp.concatenate([l2, l1], axis=0)], axis=1)
    Me_ref = jnp.einsum('bcn,cd,bdm->bnm', X, W, Y)
    Mp_ref = jnp.einsum('bcn,bcm->bnm', Ux, Uy)

    assert Me.shape == (B, Nx, Ny) and Mp.shape == (B, Px, Py)
    assert jnp.allclose(Me, Me_ref, atol=1e-4, rtol=1e-4)
    assert jnp.allclose(Mp, Mp_ref, atol=1e-4, rtol=1e-4)

    print("KERNEL_OK")
</pallas_src>

<mosaic_0001>
module attributes {stable_mosaic.version = 11 : i64} {
  func.func @_affinity_kernel(%arg0: i32, %arg1: memref<2x8x8xf32, #tpu.memory_space<vmem>>, %arg2: memref<8x8xf32, #tpu.memory_space<vmem>>, %arg3: memref<2x8x8xf32, #tpu.memory_space<vmem>>, %arg4: memref<2x32x8xf32, #tpu.memory_space<vmem>>, %arg5: memref<2x32x8xf32, #tpu.memory_space<vmem>>, %arg6: memref<2x8x8xf32, #tpu.memory_space<vmem>>, %arg7: memref<2x8x8xf32, #tpu.memory_space<vmem>>) attributes {dimension_semantics = [#tpu.dimension_semantics<parallel>], iteration_bounds = array<i64: 1>, scalar_prefetch = 0 : i64, scratch_operands = 0 : i64, tpu.core_type = #tpu.core_type<tc>, window_params = [{transform_indices = @transform_0, window_bounds = array<i64: 2, 8, 8>}, {pipeline_mode = #tpu.pipeline_mode<synchronous>, transform_indices = @transform_1, window_bounds = array<i64: 8, 8>}, {transform_indices = @transform_2, window_bounds = array<i64: 2, 8, 8>}, {transform_indices = @transform_3, window_bounds = array<i64: 2, 32, 8>}, {transform_indices = @transform_4, window_bounds = array<i64: 2, 32, 8>}, {transform_indices = @transform_5, window_bounds = array<i64: 2, 8, 8>}, {transform_indices = @transform_6, window_bounds = array<i64: 2, 8, 8>}]} {
    %c0 = arith.constant 0 : index
    %c0_0 = arith.constant 0 : index
    %c0_1 = arith.constant 0 : index
    %0 = vector.load %arg1[%c0, %c0_0, %c0_1] : memref<2x8x8xf32, #tpu.memory_space<vmem>>, vector<2x8x8xf32>
    %c0_2 = arith.constant 0 : index
    %c0_3 = arith.constant 0 : index
    %1 = vector.load %arg2[%c0_2, %c0_3] : memref<8x8xf32, #tpu.memory_space<vmem>>, vector<8x8xf32>
    %c0_4 = arith.constant 0 : index
    %c0_5 = arith.constant 0 : index
    %c0_6 = arith.constant 0 : index
    %2 = vector.load %arg3[%c0_4, %c0_5, %c0_6] : memref<2x8x8xf32, #tpu.memory_space<vmem>>, vector<2x8x8xf32>
    %c0_7 = arith.constant 0 : index
    %c0_8 = arith.constant 0 : index
    %c0_9 = arith.constant 0 : index
    %3 = vector.load %arg4[%c0_7, %c0_8, %c0_9] : memref<2x32x8xf32, #tpu.memory_space<vmem>>, vector<2x32x8xf32>
    %c0_10 = arith.constant 0 : index
    %c0_11 = arith.constant 0 : index
    %c0_12 = arith.constant 0 : index
    %4 = vector.load %arg5[%c0_10, %c0_11, %c0_12] : memref<2x32x8xf32, #tpu.memory_space<vmem>>, vector<2x32x8xf32>
    %cst = arith.constant dense<0.000000e+00> : vector<2x8x8xf32>
    %5 = tpu.matmul %0, %1, %cst {dimension_numbers = #tpu.dot_dimension_numbers<[1], [0], [0, 2], [1], [0, 0, 0, 2, 1, 1], [], []>} : vector<2x8x8xf32>, vector<8x8xf32>, vector<2x8x8xf32> -> vector<2x8x8xf32>
    %cst_13 = arith.constant dense<0.000000e+00> : vector<2x8x8xf32>
    %6 = tpu.matmul %5, %2, %cst_13 {dimension_numbers = #tpu.dot_dimension_numbers<[2], [1], [1], [2], [0, 0, 0, 1, 1, 2], [0], [0]>} : vector<2x8x8xf32>, vector<2x8x8xf32>, vector<2x8x8xf32> -> vector<2x8x8xf32>
    %c0_14 = arith.constant 0 : index
    %c0_15 = arith.constant 0 : index
    %c0_16 = arith.constant 0 : index
    %7 = vector.load %arg6[%c0_14, %c0_15, %c0_16] : memref<2x8x8xf32, #tpu.memory_space<vmem>>, vector<2x8x8xf32>
    tpu.vector_store %arg6[%c0_14, %c0_15, %c0_16], %6 {strides = array<i32>} : memref<2x8x8xf32, #tpu.memory_space<vmem>>, vector<2x8x8xf32>,
    %cst_17 = arith.constant dense<0.000000e+00> : vector<2x8x8xf32>
    %8 = tpu.matmul %3, %4, %cst_17 {dimension_numbers = #tpu.dot_dimension_numbers<[1], [1], [2], [2], [0, 0, 0, 2, 1, 2], [0], [0]>} : vector<2x32x8xf32>, vector<2x32x8xf32>, vector<2x8x8xf32> -> vector<2x8x8xf32>
    %c0_18 = arith.constant 0 : index
    %c0_19 = arith.constant 0 : index
    %c0_20 = arith.constant 0 : index
    %9 = vector.load %arg7[%c0_18, %c0_19, %c0_20] : memref<2x8x8xf32, #tpu.memory_space<vmem>>, vector<2x8x8xf32>
    tpu.vector_store %arg7[%c0_18, %c0_19, %c0_20], %8 {strides = array<i32>} : memref<2x8x8xf32, #tpu.memory_space<vmem>>, vector<2x8x8xf32>,
    return
  }
  func.func @transform_0(%arg0: i32) -> (i32, i32, i32) {
    %c0_i32 = arith.constant 0 : i32
    %c0_i32_0 = arith.constant 0 : i32
    %c0_i32_1 = arith.constant 0 : i32
    return %arg0, %c0_i32, %c0_i32_0 : i32, i32, i32
  }
  func.func @transform_1(%arg0: i32) -> (i32, i32) {
    %c0_i32 = arith.constant 0 : i32
    %c0_i32_0 = arith.constant 0 : i32
    %c0_i32_1 = arith.constant 0 : i32
    return %c0_i32, %c0_i32_0 : i32, i32
  }
  func.func @transform_2(%arg0: i32) -> (i32, i32, i32) {
    %c0_i32 = arith.constant 0 : i32
    %c0_i32_0 = arith.constant 0 : i32
    %c0_i32_1 = arith.constant 0 : i32
    return %arg0, %c0_i32, %c0_i32_0 : i32, i32, i32
  }
  func.func @transform_3(%arg0: i32) -> (i32, i32, i32) {
    %c0_i32 = arith.constant 0 : i32
    %c0_i32_0 = arith.constant 0 : i32
    %c0_i32_1 = arith.constant 0 : i32
    return %arg0, %c0_i32, %c0_i32_0 : i32, i32, i32
  }
  func.func @transform_4(%arg0: i32) -> (i32, i32, i32) {
    %c0_i32 = arith.constant 0 : i32
    %c0_i32_0 = arith.constant 0 : i32
    %c0_i32_1 = arith.constant 0 : i32
    return %arg0, %c0_i32, %c0_i32_0 : i32, i32, i32
  }
  func.func @transform_5(%arg0: i32) -> (i32, i32, i32) {
    %c0_i32 = arith.constant 0 : i32
    %c0_i32_0 = arith.constant 0 : i32
    %c0_i32_1 = arith.constant 0 : i32
    return %arg0, %c0_i32, %c0_i32_0 : i32, i32, i32
  }
  func.func @transform_6(%arg0: i32) -> (i32, i32, i32) {
    %c0_i32 = arith.constant 0 : i32
    %c0_i32_0 = arith.constant 0 : i32
    %c0_i32_1 = arith.constant 0 : i32
    return %arg0, %c0_i32, %c0_i32_0 : i32, i32, i32
  }
}

</mosaic_0001>

<llo_original>
// kernel: affinity_forward.1
$region0: #{affinity_forward.1}
  #allocation0 [shape = 'u32[]', space=smem, size = 0x4, offset = 0x4, fixed_abs, tag = 'smem constant byte address 0x4 - core index']
  #allocation1 [shape = 'u32[72,128]{1,0:T(1,128)}', space=vmem, size = 0x9000, scoped, tag = 'internal scratch']
  %s0 = inlined_call_operand.vmem [shape: f32[2,8,8], index: 0, kind: input, shape index: {}]
  %s1 = inlined_call_operand.vmem [shape: f32[8,8], index: 1, kind: input, shape index: {}]
  %s2 = inlined_call_operand.vmem [shape: f32[2,8,8], index: 2, kind: input, shape index: {}]
  %s3 = inlined_call_operand.vmem [shape: f32[2,32,8], index: 3, kind: input, shape index: {}]
  %s4 = inlined_call_operand.vmem [shape: f32[2,32,8], index: 4, kind: input, shape index: {}]
  %s5 = inlined_call_operand.hbm [shape: f32[2,8,8], index: 5, kind: output, shape index: {0}]
  %s6 = inlined_call_operand.hbm [shape: f32[2,8,8], index: 6, kind: output, shape index: {1}]
  %7 = xla_tuple %s5, %s6
  %s8 = sld [smem:[#allocation0]]
  $region38: #{affinity_forward.1} parent=0
    _
  %s10 = ssub.s32 1, %s8
  %s11 = scalar_select 0, %s10, %s8
  $region1: #{affinity_forward.1} parent=0
    #allocation2 [shape = 'u8[8192]{0}', space=vmem, size = 0x2000, scoped, tag = 'output window, operand 0, single buffered']
    #allocation3 [shape = 's32[1]{0}', space=sflag, size = 0x4, scoped, tag = 'scoped memory for affinity_forward.1']
    #allocation4 [shape = 'u8[8192]{0}', space=vmem, size = 0x2000, scoped, tag = 'output window, operand 1, single buffered']
    #allocation5 [shape = 's32[1]{0}', space=sflag, size = 0x4, scoped, tag = 'scoped memory for affinity_forward.1']
    %12 = vsyncpa [#allocation3], 0
    %13 = vsyncpa [#allocation5], 0
    // Predicated region
    $region2: #{affinity_forward.1} parent=1 // pred_check
      _
    $region3: #{affinity_forward.1} parent=1 // pred_check_branch
      %15 = sbr.rel (0) target = $region5
    $region4: #{affinity_forward.1} parent=1 // pred_region
      _
    $region5: #{affinity_forward.1} parent=1 // pred_fallthru
      _
    // Predicated region
    $region6: #{affinity_forward.1} parent=1 // pred_check
      _
    $region7: #{affinity_forward.1} parent=1 // pred_check_branch
      %17 = sbr.rel (0) target = $region9
    $region8: #{affinity_forward.1} parent=1 // pred_region
      _
    $region9: #{affinity_forward.1} parent=1 // pred_fallthru
      _
    // Predicated region
    $region10: #{affinity_forward.1} parent=1 // pred_check
      _
    $region11: #{affinity_forward.1} parent=1 // pred_check_branch
      %19 = sbr.rel (0) target = $region13
    $region12: #{affinity_forward.1} parent=1 // pred_region
      _
    $region13: #{affinity_forward.1} parent=1 // pred_fallthru
      _
    // Predicated region
    $region14: #{affinity_forward.1} parent=1 // pred_check
      _
    $region15: #{affinity_forward.1} parent=1 // pred_check_branch
      %21 = sbr.rel (0) target = $region17
    $region16: #{affinity_forward.1} parent=1 // pred_region
      _
    $region17: #{affinity_forward.1} parent=1 // pred_fallthru
      _
    // Predicated region
    $region18: #{affinity_forward.1} parent=1 // pred_check
      _
    $region19: #{affinity_forward.1} parent=1 // pred_check_branch
      %23 = sbr.rel (0) target = $region21
    $region20: #{affinity_forward.1} parent=1 // pred_region
      _
    $region21: #{affinity_forward.1} parent=1 // pred_fallthru
      _
    %v24 = vld [vmem:[%s0] sm:$0xff]
    %v25 = vld [vmem:[%s0 + $0x8] sm:$0xff]
    %v26 = vld [vmem:[%s1] sm:$0xff]
    %v27 = vld [vmem:[%s2] sm:$0xff]
    %v28 = vld [vmem:[%s2 + $0x8] sm:$0xff]
    %v29 = vld [vmem:[%s3] sm:$0xff]
    %v30 = vld [vmem:[%s3 + $0x8] sm:$0xff]
    %v31 = vld [vmem:[%s3 + $0x10] sm:$0xff]
    %v32 = vld [vmem:[%s3 + $0x18] sm:$0xff]
    %v33 = vld [vmem:[%s3 + $0x20] sm:$0xff]
    %v34 = vld [vmem:[%s3 + $0x28] sm:$0xff]
    %v35 = vld [vmem:[%s3 + $0x30] sm:$0xff]
    %v36 = vld [vmem:[%s3 + $0x38] sm:$0xff]
    %v37 = vld [vmem:[%s4] sm:$0xff]
    %v38 = vld [vmem:[%s4 + $0x8] sm:$0xff]
    %v39 = vld [vmem:[%s4 + $0x10] sm:$0xff]
    %v40 = vld [vmem:[%s4 + $0x18] sm:$0xff]
    %v41 = vld [vmem:[%s4 + $0x20] sm:$0xff]
    %v42 = vld [vmem:[%s4 + $0x28] sm:$0xff]
    %v43 = vld [vmem:[%s4 + $0x30] sm:$0xff]
    %v44 = vld [vmem:[%s4 + $0x38] sm:$0xff]
    %45 = vxpose.xlu0.b32.start [1/16] %v24, 128
    %46 = vxpose.xlu0.b32.cont [2/16] 0.0, 128
    %47 = vxpose.xlu0.b32.cont [3/16] 0.0, 128
    %48 = vxpose.xlu0.b32.cont [4/16] 0.0, 128
    %49 = vxpose.xlu0.b32.cont [5/16] 0.0, 128
    %50 = vxpose.xlu0.b32.cont [6/16] 0.0, 128
    %51 = vxpose.xlu0.b32.cont [7/16] 0.0, 128
    %52 = vxpose.xlu0.b32.cont [8/16] 0.0, 128
    %53 = vxpose.xlu0.b32.cont [9/16] 0.0, 128
    %54 = vxpose.xlu0.b32.cont [10/16] 0.0, 128
    %55 = vxpose.xlu0.b32.cont [11/16] 0.0, 128
    %56 = vxpose.xlu0.b32.cont [12/16] 0.0, 128
    %57 = vxpose.xlu0.b32.cont [13/16] 0.0, 128
    %58 = vxpose.xlu0.b32.cont [14/16] 0.0, 128
    %59 = vxpose.xlu0.b32.cont [15/16] 0.0, 128
    %60 = vxpose.xlu0.b32.end [16/16] 0.0, 128
    %v61 = vpop.trf.xlu0
    %v62 = vpop.trf.xlu0
    %v63 = vpop.trf.xlu0
    %v64 = vpop.trf.xlu0
    %v65 = vpop.trf.xlu0
    %v66 = vpop.trf.xlu0
    %v67 = vpop.trf.xlu0
    %v68 = vpop.trf.xlu0
    %v69 = vpop.trf.xlu0
    %v70 = vpop.trf.xlu0
    %v71 = vpop.trf.xlu0
    %v72 = vpop.trf.xlu0
    %v73 = vpop.trf.xlu0
    %v74 = vpop.trf.xlu0
    %v75 = vpop.trf.xlu0
    %v76 = vpop.trf.xlu0
    %77 = vxpose.xlu0.b32.start [1/16] %v25, 128
    %78 = vxpose.xlu0.b32.cont [2/16] 0.0, 128
    %79 = vxpose.xlu0.b32.cont [3/16] 0.0, 128
    %80 = vxpose.xlu0.b32.cont [4/16] 0.0, 128
    %81 = vxpose.xlu0.b32.cont [5/16] 0.0, 128
    %82 = vxpose.xlu0.b32.cont [6/16] 0.0, 128
    %83 = vxpose.xlu0.b32.cont [7/16] 0.0, 128
    %84 = vxpose.xlu0.b32.cont [8/16] 0.0, 128
    %85 = vxpose.xlu0.b32.cont [9/16] 0.0, 128
    %86 = vxpose.xlu0.b32.cont [10/16] 0.0, 128
    %87 = vxpose.xlu0.b32.cont [11/16] 0.0, 128
    %88 = vxpose.xlu0.b32.cont [12/16] 0.0, 128
    %89 = vxpose.xlu0.b32.cont [13/16] 0.0, 128
    %90 = vxpose.xlu0.b32.cont [14/16] 0.0, 128
    %91 = vxpose.xlu0.b32.cont [15/16] 0.0, 128
    %92 = vxpose.xlu0.b32.end [16/16] 0.0, 128
    %v93 = vpop.trf.xlu0
    %v94 = vpop.trf.xlu0
    %v95 = vpop.trf.xlu0
    %v96 = vpop.trf.xlu0
    %v97 = vpop.trf.xlu0
    %v98 = vpop.trf.xlu0
    %v99 = vpop.trf.xlu0
    %v100 = vpop.trf.xlu0
    %v101 = vpop.trf.xlu0
    %v102 = vpop.trf.xlu0
    %v103 = vpop.trf.xlu0
    %v104 = vpop.trf.xlu0
    %v105 = vpop.trf.xlu0
    %v106 = vpop.trf.xlu0
    %v107 = vpop.trf.xlu0
    %v108 = vpop.trf.xlu0
    %vm109 = vcmask 64512
    %v111 = vsel %vm109, %v61, 0
    %v114 = vsel %vm109, %v93, 0
    %116 = vmatpush.msra.mxu0 0.0
    %117 = vmatpush.msra.mxu0 0.0
    %118 = vmatpush.msra.mxu0 0.0
    %119 = vmatpush.msra.mxu0 0.0
    %120 = vmatpush.msra.mxu0 0.0
    %121 = vmatpush.msra.mxu0 0.0
    %122 = vmatpush.msra.mxu0 0.0
    %123 = vmatpush.msra.mxu0 0.0
    %124 = vmatpush.msra.mxu0 0.0
    %125 = vmatpush.msra.mxu0 0.0
    %126 = vmatpush.msra.mxu0 0.0
    %127 = vmatpush.msra.mxu0 0.0
    %128 = vmatpush.msra.mxu0 0.0
    %129 = vmatpush.msra.mxu0 0.0
    %130 = vmatpush.msra.mxu0 0.0
    %131 = vmatpush.msra.mxu0 %v26
    %132 = vmatmul.f32.gmra.mxu0 %v111
    %v133 = vpop.f32.mrf.mxu0
    %v134 = vadd.f32 0.0, %v133
    %135 = vmatmul.f32.gmra.mxu0 %v114
    %v136 = vpop.f32.mrf.mxu0
    %v137 = vadd.f32 0.0, %v136
    %138 = vdwg.mxu0
    %v140 = vsel %vm109, %v134, 0
    %142 = vmatpush.msra.mxu0 0.0
    %143 = vmatpush.msra.mxu0 0.0
    %144 = vmatpush.msra.mxu0 0.0
    %145 = vmatpush.msra.mxu0 0.0
    %146 = vmatpush.msra.mxu0 0.0
    %147 = vmatpush.msra.mxu0 0.0
    %148 = vmatpush.msra.mxu0 0.0
    %149 = vmatpush.msra.mxu0 0.0
    %150 = vmatpush.msra.mxu0 0.0
    %151 = vmatpush.msra.mxu0 0.0
    %152 = vmatpush.msra.mxu0 0.0
    %153 = vmatpush.msra.mxu0 0.0
    %154 = vmatpush.msra.mxu0 0.0
    %155 = vmatpush.msra.mxu0 0.0
    %156 = vmatpush.msra.mxu0 0.0
    %157 = vmatpush.msra.mxu0 %v27
    %158 = vmatmul.f32.gmra.mxu0 %v140
    %v159 = vpop.f32.mrf.mxu0
    %v160 = vadd.f32 0.0, %v159
    %161 = vdwg.mxu0
    %v163 = vsel %vm109, %v137, 0
    %165 = vmatpush.msra.mxu0 0.0
    %166 = vmatpush.msra.mxu0 0.0
    %167 = vmatpush.msra.mxu0 0.0
    %168 = vmatpush.msra.mxu0 0.0
    %169 = vmatpush.msra.mxu0 0.0
    %170 = vmatpush.msra.mxu0 0.0
    %171 = vmatpush.msra.mxu0 0.0
    %172 = vmatpush.msra.mxu0 0.0
    %173 = vmatpush.msra.mxu0 0.0
    %174 = vmatpush.msra.mxu0 0.0
    %175 = vmatpush.msra.mxu0 0.0
    %176 = vmatpush.msra.mxu0 0.0
    %177 = vmatpush.msra.mxu0 0.0
    %178 = vmatpush.msra.mxu0 0.0
    %179 = vmatpush.msra.mxu0 0.0
    %180 = vmatpush.msra.mxu0 %v28
    %181 = vmatmul.f32.gmra.mxu0 %v163
    %v182 = vpop.f32.mrf.mxu0
    %v183 = vadd.f32 0.0, %v182
    %184 = vdwg.mxu0
    %185 = vst.msk [vmem:[#allocation2] sm:$0xff] %vm109, %v160
    %186 = vst.msk [vmem:[#allocation2 + $0x8] sm:$0xff] %vm109, %v183
    %187 = vxpose.xlu0.b32.start [1/16] %v29, 128
    %188 = vxpose.xlu0.b32.cont [2/16] %v30, 128
    %189 = vxpose.xlu0.b32.cont [3/16] %v31, 128
    %190 = vxpose.xlu0.b32.cont [4/16] %v32, 128
    %191 = vxpose.xlu0.b32.cont [5/16] 0.0, 128
    %192 = vxpose.xlu0.b32.cont [6/16] 0.0, 128
    %193 = vxpose.xlu0.b32.cont [7/16] 0.0, 128
    %194 = vxpose.xlu0.b32.cont [8/16] 0.0, 128
    %195 = vxpose.xlu0.b32.cont [9/16] 0.0, 128
    %196 = vxpose.xlu0.b32.cont [10/16] 0.0, 128
    %197 = vxpose.xlu0.b32.cont [11/16] 0.0, 128
    %198 = vxpose.xlu0.b32.cont [12/16] 0.0, 128
    %199 = vxpose.xlu0.b32.cont [13/16] 0.0, 128
    %200 = vxpose.xlu0.b32.cont [14/16] 0.0, 128
    %201 = vxpose.xlu0.b32.cont [15/16] 0.0, 128
    %202 = vxpose.xlu0.b32.end [16/16] 0.0, 128
    %v203 = vpop.trf.xlu0
    %v204 = vpop.trf.xlu0
    %v205 = vpop.trf.xlu0
    %v206 = vpop.trf.xlu0
    %v207 = vpop.trf.xlu0
    %v208 = vpop.trf.xlu0
    %v209 = vpop.trf.xlu0
    %v210 = vpop.trf.xlu0
    %v211 = vpop.trf.xlu0
    %v212 = vpop.trf.xlu0
    %v213 = vpop.trf.xlu0
    %v214 = vpop.trf.xlu0
    %v215 = vpop.trf.xlu0
    %v216 = vpop.trf.xlu0
    %v217 = vpop.trf.xlu0
    %v218 = vpop.trf.xlu0
    %vm219 = vcmask 261120
    %v221 = vsel %vm219, %v203, 0
    %223 = vmatpush.msra.mxu0 0.0
    %224 = vmatpush.msra.mxu0 0.0
    %225 = vmatpush.msra.mxu0 0.0
    %226 = vmatpush.msra.mxu0 0.0
    %227 = vmatpush.msra.mxu0 0.0
    %228 = vmatpush.msra.mxu0 0.0
    %229 = vmatpush.msra.mxu0 0.0
    %230 = vmatpush.msra.mxu0 0.0
    %231 = vmatpush.msra.mxu0 0.0
    %232 = vmatpush.msra.mxu0 0.0
    %233 = vmatpush.msra.mxu0 0.0
    %234 = vmatpush.msra.mxu0 0.0
    %235 = vmatpush.msra.mxu0 %v40
    %236 = vmatpush.msra.mxu0 %v39
    %237 = vmatpush.msra.mxu0 %v38
    %238 = vmatpush.msra.mxu0 %v37
    %239 = vmatmul.f32.gmra.mxu0 %v221
    %v240 = vpop.f32.mrf.mxu0
    %v241 = vadd.f32 0.0, %v240
    %242 = vdwg.mxu0
    %243 = vxpose.xlu0.b32.start [1/16] %v33, 128
    %244 = vxpose.xlu0.b32.cont [2/16] %v34, 128
    %245 = vxpose.xlu0.b32.cont [3/16] %v35, 128
    %246 = vxpose.xlu0.b32.cont [4/16] %v36, 128
    %247 = vxpose.xlu0.b32.cont [5/16] 0.0, 128
    %248 = vxpose.xlu0.b32.cont [6/16] 0.0, 128
    %249 = vxpose.xlu0.b32.cont [7/16] 0.0, 128
    %250 = vxpose.xlu0.b32.cont [8/16] 0.0, 128
    %251 = vxpose.xlu0.b32.cont [9/16] 0.0, 128
    %252 = vxpose.xlu0.b32.cont [10/16] 0.0, 128
    %253 = vxpose.xlu0.b32.cont [11/16] 0.0, 128
    %254 = vxpose.xlu0.b32.cont [12/16] 0.0, 128
    %255 = vxpose.xlu0.b32.cont [13/16] 0.0, 128
    %256 = vxpose.xlu0.b32.cont [14/16] 0.0, 128
    %257 = vxpose.xlu0.b32.cont [15/16] 0.0, 128
    %258 = vxpose.xlu0.b32.end [16/16] 0.0, 128
    %v259 = vpop.trf.xlu0
    %v260 = vpop.trf.xlu0
    %v261 = vpop.trf.xlu0
    %v262 = vpop.trf.xlu0
    %v263 = vpop.trf.xlu0
    %v264 = vpop.trf.xlu0
    %v265 = vpop.trf.xlu0
    %v266 = vpop.trf.xlu0
    %v267 = vpop.trf.xlu0
    %v268 = vpop.trf.xlu0
    %v269 = vpop.trf.xlu0
    %v270 = vpop.trf.xlu0
    %v271 = vpop.trf.xlu0
    %v272 = vpop.trf.xlu0
    %v273 = vpop.trf.xlu0
    %v274 = vpop.trf.xlu0
    %v276 = vsel %vm219, %v259, 0
    %278 = vmatpush.msra.mxu0 0.0
    %279 = vmatpush.msra.mxu0 0.0
    %280 = vmatpush.msra.mxu0 0.0
    %281 = vmatpush.msra.mxu0 0.0
    %282 = vmatpush.msra.mxu0 0.0
    %283 = vmatpush.msra.mxu0 0.0
    %284 = vmatpush.msra.mxu0 0.0
    %285 = vmatpush.msra.mxu0 0.0
    %286 = vmatpush.msra.mxu0 0.0
    %287 = vmatpush.msra.mxu0 0.0
    %288 = vmatpush.msra.mxu0 0.0
    %289 = vmatpush.msra.mxu0 0.0
    %290 = vmatpush.msra.mxu0 %v44
    %291 = vmatpush.msra.mxu0 %v43
    %292 = vmatpush.msra.mxu0 %v42
    %293 = vmatpush.msra.mxu0 %v41
    %294 = vmatmul.f32.gmra.mxu0 %v276
    %v295 = vpop.f32.mrf.mxu0
    %v296 = vadd.f32 0.0, %v295
    %297 = vdwg.mxu0
    %298 = vst.msk [vmem:[#allocation4] sm:$0xff] %vm109, %v241
    %299 = vst.msk [vmem:[#allocation4 + $0x8] sm:$0xff] %vm109, %v296
    // Predicated region
    $region22: #{affinity_forward.1} parent=1 // pred_check
      _
    $region23: #{affinity_forward.1} parent=1 // pred_check_branch
      %301 = sbr.rel (0) target = $region25
    $region24: #{affinity_forward.1} parent=1 // pred_region
      %303 = vsyncadd [#allocation3], 0
      %s304 = sshll.u32 [#allocation2], 4
      %s305 = int_to_ptr.vmem [resolvable:$true] %s304
      %s306 = sshll.u32 %s5, 4
      %s307 = int_to_ptr.hbm [resolvable:$true] %s306
      %312 = dma.vmem_to_hbm [thread:$0]  %s305, 256, %s307, [#allocation3], 128, 128, 8
    $region25: #{affinity_forward.1} parent=1 // pred_fallthru
      _
    // Predicated region
    $region26: #{affinity_forward.1} parent=1 // pred_check
      _
    $region27: #{affinity_forward.1} parent=1 // pred_check_branch
      %314 = sbr.rel (0) target = $region29
    $region28: #{affinity_forward.1} parent=1 // pred_region
      %316 = vsyncadd [#allocation5], 0
      %s317 = sshll.u32 [#allocation4], 4
      %s318 = int_to_ptr.vmem [resolvable:$true] %s317
      %s319 = sshll.u32 %s6, 4
      %s320 = int_to_ptr.hbm [resolvable:$true] %s319
      %325 = dma.vmem_to_hbm [thread:$0]  %s318, 256, %s320, [#allocation5], 128, 128, 8
    $region29: #{affinity_forward.1} parent=1 // pred_fallthru
      _
    // Predicated region
    $region30: #{affinity_forward.1} parent=1 // pred_check
      _
    $region31: #{affinity_forward.1} parent=1 // pred_check_branch
      %327 = sbr.rel (0) target = $region33
    $region32: #{affinity_forward.1} parent=1 // pred_region
      %329 = dma.done [#allocation3], 256
    $region33: #{affinity_forward.1} parent=1 // pred_fallthru
      _
    // Predicated region
    $region34: #{affinity_forward.1} parent=1 // pred_check
      _
    $region35: #{affinity_forward.1} parent=1 // pred_check_branch
      %331 = sbr.rel (0) target = $region37
    $region36: #{affinity_forward.1} parent=1 // pred_region
      %333 = dma.done [#allocation5], 256
    $region37: #{affinity_forward.1} parent=1 // pred_fallthru
      _
    %334 = vsyncpa [#allocation3], 1
    %335 = vsyncpa [#allocation5], 1

</llo_original>
